<compile_context>
chip_gen: v7x
topology: tpu7x:2x2x1
jax: 0.10.0
libtpu: 0.0.40
codegen_flags: <defaults>
</compile_context>

<pallas_src>
import math

import jax
import jax.numpy as jnp
from jax.experimental import pallas as pl
from jax.experimental.pallas import tpu as pltpu


def _round_up(x, m):
    return ((x + m - 1) // m) * m


# ----------------------------- kernel -----------------------------
def _make_sinpos_kernel(r):
    """Kernel for a fold factor r (static Python int, loop fully unrolled)."""

    def kernel(idx_ref, tab_ref, out_ref):
        # idx_ref: (bn, r)      f32 positions, r original rows folded per block row
        # tab_ref: (r+1, r*d)   rows 0..r-1: lane-masked duplicated frequencies, row r: phase bias
        # out_ref: (bn, r*d)
        idx = idx_ref[...]
        tab = tab_ref[...]
        # omega[i, j*d + k] = idx[i, j] * freq[k]   (other folds contribute exact 0.0)
        omega = idx[:, 0:1] * tab[0:1, :]
        for j in range(1, r):
            omega = omega + idx[:, j : j + 1] * tab[j : j + 1, :]
        # even lanes: sin(x + 0); odd lanes: sin(x + pi/2) == cos(x) up to fl(pi/2) error
        out_ref[...] = jnp.sin(omega + tab[r : r + 1, :]).astype(out_ref.dtype)

    return kernel


# ----------------------------- tables -----------------------------
def make_sinusoidal_tables(d_model, r):
    """(r+1, r*d_model) table: r lane-masked frequency rows + 1 phase-bias row (all f32)."""
    # same expression as the torch buffer: exp(arange(0, d, 2) * (-ln(10000)/d))
    div_indices = jnp.arange(0, d_model, 2, dtype=jnp.float32)
    div_term = jnp.exp(div_indices * (-math.log(10000.0) / d_model))          # (d/2,)
    freq_row = jnp.repeat(div_term, 2)                                        # (d,) lanes 2m,2m+1 share div_term[m]
    bias_row = jnp.where(jnp.arange(d_model) % 2 == 0,
                         jnp.float32(0.0), jnp.float32(math.pi / 2.0))        # (d,) sin / cos via phase

    rd = r * d_model
    lane_fold = jnp.arange(rd) // d_model                                     # which folded row owns each lane
    freq_tiled = jnp.tile(freq_row, r)                                        # (rd,)
    freq_rows = jnp.where(lane_fold[None, :] == jnp.arange(r)[:, None],
                          freq_tiled[None, :], 0.0)                           # (r, rd) lane-masked
    bias_tiled = jnp.tile(bias_row, r)[None, :]                               # (1, rd)
    return jnp.concatenate([freq_rows, bias_tiled], axis=0).astype(jnp.float32)


# ----------------------------- wrapper -----------------------------
def _fold_factor(d_model):
    """How many rows to fold into the lane axis so the stored lane width is a multiple of 128."""
    if d_model % 128 == 0:
        return 1
    r = math.lcm(d_model, 128) // d_model
    return r if r <= 16 else 1  # very small d_model: fall back to unfolded (masked) stores


def _choose_block_rows(n_rows, lane_width, per_buffer_bytes):
    # ~8 MiB per output buffer (double-buffered -> 16 MiB), safe with vmem_limit_bytes=40 MiB
    cap = max(8, (per_buffer_bytes // (4 * lane_width)) // 8 * 8)
    if n_rows >= 16:
        # keep >= 2 grid steps so the "parallel" axis can shard across v7x's two TensorCores
        cap = min(cap, max(8, ((n_rows + 1) // 2) // 8 * 8))
    return n_rows if cap >= n_rows else cap


def sinusoidal_positional_embedding(emb_indices, tab, d_model, r, *,
                                    per_buffer_bytes=8 << 20,
                                    out_dtype=jnp.float32):
    input_shape = emb_indices.shape
    flat = jnp.reshape(emb_indices, (-1,)).astype(jnp.float32)
    n = flat.shape[0]

    # pad only to a multiple of the (tiny) fold factor r; usually a no-op
    n_pad = _round_up(max(n, 1), r)
    if n_pad != n:
        flat = jnp.pad(flat, (0, n_pad - n))

    n_rows = n_pad // r
    rd = r * d_model
    idx2d = flat.reshape(n_rows, r)

    bn = _choose_block_rows(n_rows, rd, per_buffer_bytes)
    grid = (pl.cdiv(n_rows, bn),)  # Pallas masks the final partial block; no pad-to-block needed

    out = pl.pallas_call(
        _make_sinpos_kernel(r),
        out_shape=jax.ShapeDtypeStruct((n_rows, rd), out_dtype),
        grid=grid,
        in_specs=[
            pl.BlockSpec((bn, r), lambda i: (i, 0)),         # folded positions (sublane axis)
            pl.BlockSpec((r + 1, rd), lambda i: (0, 0)),     # resident freq/bias table
        ],
        out_specs=pl.BlockSpec((bn, rd), lambda i: (i, 0)),  # lane-dense (multiple of 128 when folded)
        compiler_params=pltpu.CompilerParams(
            dimension_semantics=("parallel",),
            vmem_limit_bytes=40 * 1024 * 1024,
        ),
    )(idx2d, tab)

    # (n_rows, r*d) and (n_pad, d) share the same row-major bytes: free re-view, no data movement
    out = out.reshape(n_pad, d_model)
    if n_pad != n:
        out = out[:n]
    return out.reshape(*input_shape, d_model)


class SinusoidalPositionalEmbedding:
    def __init__(self, d_model, per_buffer_bytes=8 << 20):
        if d_model % 2 != 0:
            raise ValueError(f"Sinusoidal positional encoding with odd d_model: {d_model}")
        self.d_model = d_model
        self.per_buffer_bytes = per_buffer_bytes
        self.r = _fold_factor(d_model)
        self.tab = make_sinusoidal_tables(d_model, self.r)   # analogue of register_buffer('div_term', ...)

    def __call__(self, emb_indices):
        return sinusoidal_positional_embedding(emb_indices, self.tab, self.d_model, self.r,
                                                per_buffer_bytes=self.per_buffer_bytes)


# ----------------- pure-JAX reference (mirrors the torch forward) -----------------
def _reference(emb_indices, d_model):
    div_indices = jnp.arange(0, d_model, 2, dtype=jnp.float32)
    div_term = jnp.exp(div_indices * (-math.log(10000.0) / d_model))
    omegas = emb_indices.reshape(-1, 1, 1).astype(jnp.float32) * div_term.reshape(1, -1, 1)
    emb = jnp.concatenate([jnp.sin(omegas), jnp.cos(omegas)], axis=2)
    return emb.reshape(*emb_indices.shape, d_model)


if __name__ == "__main__":
    key = jax.random.PRNGKey(0)
    k1, k2 = jax.random.split(key)

    # main case: d_model=64 -> fold factor 2 (128-lane dense stores), 2 parallel grid steps
    d_model = 64
    emb_indices = jax.random.uniform(k1, (2, 4, 16), jnp.float32, 0.0, 50.0)
    module = SinusoidalPositionalEmbedding(d_model)
    out = jax.block_until_ready(module(emb_indices))
    assert out.shape == (2, 4, 16, d_model)
    assert bool(jnp.all(jnp.isfinite(out)))
    assert bool(jnp.allclose(out, _reference(emb_indices, d_model), atol=1e-5, rtol=1e-5))

    # ragged case: n=5 not a multiple of the fold factor -> minimal pad + tail slice
    idx_b = jax.random.uniform(k2, (5,), jnp.float32, 0.0, 50.0)
    out_b = jax.block_until_ready(module(idx_b))
    assert out_b.shape == (5, d_model)
    assert bool(jnp.allclose(out_b, _reference(idx_b, d_model), atol=1e-5, rtol=1e-5))

    # already lane-dense case: d_model=128 -> no fold, partial final block via pl.cdiv grid
    module128 = SinusoidalPositionalEmbedding(128)
    idx_c = jnp.arange(21, dtype=jnp.float32).reshape(3, 7)
    out_c = jax.block_until_ready(module128(idx_c))
    assert out_c.shape == (3, 7, 128)
    assert bool(jnp.allclose(out_c, _reference(idx_c, 128), atol=1e-5, rtol=1e-5))

    print("KERNEL_OK")
</pallas_src>

<mosaic_0001>
module attributes {stable_mosaic.version = 11 : i64} {
  func.func @kernel(%arg0: i32, %arg1: memref<32x2xf32, #tpu.memory_space<vmem>>, %arg2: memref<3x128xf32, #tpu.memory_space<vmem>>, %arg3: memref<32x128xf32, #tpu.memory_space<vmem>>) attributes {dimension_semantics = [#tpu.dimension_semantics<parallel>], iteration_bounds = array<i64: 2>, scalar_prefetch = 0 : i64, scratch_operands = 0 : i64, tpu.core_type = #tpu.core_type<tc>, window_params = [{transform_indices = @transform_0, window_bounds = array<i64: 32, 2>}, {pipeline_mode = #tpu.pipeline_mode<synchronous>, transform_indices = @transform_1, window_bounds = array<i64: 3, 128>}, {transform_indices = @transform_2, window_bounds = array<i64: 32, 128>}]} {
    %c0 = arith.constant 0 : index
    %c0_0 = arith.constant 0 : index
    %0 = vector.load %arg1[%c0, %c0_0] : memref<32x2xf32, #tpu.memory_space<vmem>>, vector<32x2xf32>
    %c0_1 = arith.constant 0 : index
    %c0_2 = arith.constant 0 : index
    %1 = vector.load %arg2[%c0_1, %c0_2] : memref<3x128xf32, #tpu.memory_space<vmem>>, vector<3x128xf32>
    %2 = vector.extract_strided_slice %0 {offsets = [0, 0], sizes = [32, 1], strides = [1, 1]} : vector<32x2xf32> to vector<32x1xf32>
    %3 = vector.extract_strided_slice %1 {offsets = [0, 0], sizes = [1, 128], strides = [1, 1]} : vector<3x128xf32> to vector<1x128xf32>
    %4 = vector.broadcast %2 : vector<32x1xf32> to vector<32x128xf32>
    %5 = vector.broadcast %3 : vector<1x128xf32> to vector<32x128xf32>
    %6 = arith.mulf %4, %5 : vector<32x128xf32>
    %7 = vector.extract_strided_slice %0 {offsets = [0, 1], sizes = [32, 1], strides = [1, 1]} : vector<32x2xf32> to vector<32x1xf32>
    %8 = vector.extract_strided_slice %1 {offsets = [1, 0], sizes = [1, 128], strides = [1, 1]} : vector<3x128xf32> to vector<1x128xf32>
    %9 = vector.broadcast %7 : vector<32x1xf32> to vector<32x128xf32>
    %10 = vector.broadcast %8 : vector<1x128xf32> to vector<32x128xf32>
    %11 = arith.mulf %9, %10 : vector<32x128xf32>
    %12 = arith.addf %6, %11 : vector<32x128xf32>
    %13 = vector.extract_strided_slice %1 {offsets = [2, 0], sizes = [1, 128], strides = [1, 1]} : vector<3x128xf32> to vector<1x128xf32>
    %14 = vector.broadcast %13 : vector<1x128xf32> to vector<32x128xf32>
    %15 = arith.addf %12, %14 : vector<32x128xf32>
    %16 = math.sin %15 : vector<32x128xf32>
    %c0_3 = arith.constant 0 : index
    %c0_4 = arith.constant 0 : index
    %17 = vector.load %arg3[%c0_3, %c0_4] : memref<32x128xf32, #tpu.memory_space<vmem>>, vector<32x128xf32>
    tpu.vector_store %arg3[%c0_3, %c0_4], %16 {strides = array<i32>} : memref<32x128xf32, #tpu.memory_space<vmem>>, vector<32x128xf32>,
    return
  }
  func.func @transform_0(%arg0: i32) -> (i32, i32) {
    %c0_i32 = arith.constant 0 : i32
    %c0_i32_0 = arith.constant 0 : i32
    return %arg0, %c0_i32 : i32, i32
  }
  func.func @transform_1(%arg0: i32) -> (i32, i32) {
    %c0_i32 = arith.constant 0 : i32
    %c0_i32_0 = arith.constant 0 : i32
    %c0_i32_1 = arith.constant 0 : i32
    return %c0_i32, %c0_i32_0 : i32, i32
  }
  func.func @transform_2(%arg0: i32) -> (i32, i32) {
    %c0_i32 = arith.constant 0 : i32
    %c0_i32_0 = arith.constant 0 : i32
    return %arg0, %c0_i32 : i32, i32
  }
}

</mosaic_0001>

<llo_original>
// kernel: tpu_custom_call.1
$region0: #{tpu_custom_call.1}
  #allocation0 [shape = 'u32[]', space=smem, size = 0x4, offset = 0x4, fixed_abs, tag = 'smem constant byte address 0x4 - core index']
  #allocation1 [shape = 'u32[144,128]{1,0:T(1,128)}', space=vmem, size = 0x12000, scoped, tag = 'internal scratch']
  %s0 = inlined_call_operand.vmem [shape: f32[64,2], index: 0, kind: input, shape index: {}]
  %s1 = inlined_call_operand.vmem [shape: f32[3,128], index: 1, kind: input, shape index: {}]
  %s2 = inlined_call_operand.hbm [shape: f32[64,128], index: 2, kind: output, shape index: {}]
  %s3 = sld [smem:[#allocation0]]
  $region41: #{tpu_custom_call.1} parent=0
    _
  %s5 = ssub.s32 1, %s3
  %s6 = scalar_select 0, %s5, %s3
  $region1: #{tpu_custom_call.1} parent=0
    #allocation2 [shape = 'u8[32768]{0}', space=vmem, size = 0x8000, scoped, tag = 'output window, operand 0']
    #allocation3 [shape = 's32[2]{0}', space=sflag, size = 0x8, scoped, tag = 'scoped memory for tpu_custom_call.1']
    %7 = vsyncpa [#allocation3], 0
    %s8 = scalar_lea.sflag [#allocation3], 1
    %9 = vsyncpa %s8, 0
    loop: start=0, step=1, limit=4
    $region2: #{tpu_custom_call.1} parent=1 // loop_pre_header
      _
    $region3: #{tpu_custom_call.1} parent=1 // loop_header
      %s11 = sphi 0, %s15
      %p12 = scmp.ge.s32.totalorder %s11, 4
      %s21 = sphi 0, %s23
      %s24 = sphi 0, %s21
      %s25 = sphi 0, %s24
      %s41 = sphi 0, %s25
      %s45 = sphi 0, %s45
      %s47 = sphi 0, %s45
      %s48 = sphi 0, %s47
      %s62 = sphi 0, %s48
      %s68 = sphi 0, %s70
      %s71 = sphi 0, %s68
      %s72 = sphi 0, %s71
      %s88 = sphi 0, %s72
    $region4: #{tpu_custom_call.1} parent=1 // loop_header_branch
      %14 = sbr.rel (%p12) target = $region8
    $region5: #{tpu_custom_call.1} parent=1 // loop_body
      %s16 = ssub.s32 %s11, 1
      %s17 = ssub.s32 %s11, 2
      %s18 = sadd.s32 %s11, 1
      %s19 = ssub.s32 %s11, %s18
      %p20 = scmp.eq.s32.totalorder %s19, 0
      %s22 = sadd.s32 %s21, 1
      %s23 = scalar_select %p20, %s21, %s22
      %p26 = pneg %p20
      %p27 = scmp.eq.s32.totalorder %s11, 1
      %p28 = por %p26, %p27
      %p29 = scmp.ne.s32.totalorder %s21, %s24
      %p30 = scmp.eq.s32.totalorder %s11, 0
      %p31 = por %p29, %p30
      %p32 = scmp.ne.s32.totalorder %s21, %s24
      %p33 = scmp.eq.s32.totalorder %s16, 1
      %p34 = por %p32, %p33
      %p35 = scmp.ne.s32.totalorder %s24, %s25
      %p36 = scmp.eq.s32.totalorder %s16, 0
      %p37 = por %p35, %p36
      %p38 = scmp.ne.s32.totalorder %s24, %s25
      %p39 = scmp.eq.s32.totalorder %s17, 1
      %p40 = por %p38, %p39
      %p42 = scmp.ne.s32.totalorder %s25, %s41
      %p43 = scmp.eq.s32.totalorder %s17, 0
      %p44 = por %p42, %p43
      %s46 = sadd.s32 %s45, 1
      %p49 = scmp.eq.s32.totalorder %s11, 1
      %p50 = scmp.ne.s32.totalorder %s45, %s47
      %p51 = scmp.eq.s32.totalorder %s11, 0
      %p52 = por %p50, %p51
      %p53 = scmp.ne.s32.totalorder %s45, %s47
      %p54 = scmp.eq.s32.totalorder %s16, 1
      %p55 = por %p53, %p54
      %p56 = scmp.ne.s32.totalorder %s47, %s48
      %p57 = scmp.eq.s32.totalorder %s16, 0
      %p58 = por %p56, %p57
      %p59 = scmp.ne.s32.totalorder %s47, %s48
      %p60 = scmp.eq.s32.totalorder %s17, 1
      %p61 = por %p59, %p60
      %p63 = scmp.ne.s32.totalorder %s48, %s62
      %p64 = scmp.eq.s32.totalorder %s17, 0
      %p65 = por %p63, %p64
      %s66 = ssub.s32 %s11, %s18
      %p67 = scmp.eq.s32.totalorder %s66, 0
      %s69 = sadd.s32 %s68, 1
      %s70 = scalar_select %p67, %s68, %s69
      %p73 = pneg %p67
      %p74 = scmp.eq.s32.totalorder %s11, 1
      %p75 = por %p73, %p74
      %p76 = scmp.ne.s32.totalorder %s68, %s71
      %p77 = scmp.eq.s32.totalorder %s11, 0
      %p78 = por %p76, %p77
      %p79 = scmp.ne.s32.totalorder %s68, %s71
      %p80 = scmp.eq.s32.totalorder %s16, 1
      %p81 = por %p79, %p80
      %p82 = scmp.ne.s32.totalorder %s71, %s72
      %p83 = scmp.eq.s32.totalorder %s16, 0
      %p84 = por %p82, %p83
      %p85 = scmp.ne.s32.totalorder %s71, %s72
      %p86 = scmp.eq.s32.totalorder %s17, 1
      %p87 = por %p85, %p86
      %p89 = scmp.ne.s32.totalorder %s72, %s88
      %p90 = scmp.eq.s32.totalorder %s17, 0
      %p91 = por %p89, %p90
      %p92 = scmp.le.s32.totalorder 1, %s11
      %p93 = scmp.lt.s32.totalorder %s11, 3
      %p94 = pnand %p92, %p93
      %p95 = pneg %p94
      // Predicated region
      $region9: #{tpu_custom_call.1} parent=5 // pred_check
        _
      $region10: #{tpu_custom_call.1} parent=5 // pred_check_branch
        %97 = sbr.rel (%p94) target = $region12
      $region11: #{tpu_custom_call.1} parent=5 // pred_region
        %s98 = ssub.s32 %s11, 1
        // Predicated region
        $region13: #{tpu_custom_call.1} parent=11 // pred_check
          %p99 = pneg %p58
        $region14: #{tpu_custom_call.1} parent=11 // pred_check_branch
          %101 = sbr.rel (%p99) target = $region16
        $region15: #{tpu_custom_call.1} parent=11 // pred_region
          _
        $region16: #{tpu_custom_call.1} parent=11 // pred_fallthru
          _
      $region12: #{tpu_custom_call.1} parent=5 // pred_fallthru
        _
      %p102 = scmp.lt.s32.totalorder %s11, 2
      // Predicated region
      $region17: #{tpu_custom_call.1} parent=5 // pred_check
        %p103 = pneg %p102
      $region18: #{tpu_custom_call.1} parent=5 // pred_check_branch
        %105 = sbr.rel (%p103) target = $region20
      $region19: #{tpu_custom_call.1} parent=5 // pred_region
        // Predicated region
        $region21: #{tpu_custom_call.1} parent=19 // pred_check
          %p106 = pneg %p31
        $region22: #{tpu_custom_call.1} parent=19 // pred_check_branch
          %108 = sbr.rel (%p106) target = $region24
        $region23: #{tpu_custom_call.1} parent=19 // pred_region
          %s109 = smul.u32 4, %s11
          %p110 = scmp.lt.s32.totalorder %s109, 7
          %s111 = scalar_select %p110, %s109, 7
          %s112 = smul.addr %s111, 8
          %s113 = scalar_lea.vmem %s0, %s112
          %s114 = smul.u32 4, %s11
        $region24: #{tpu_custom_call.1} parent=19 // pred_fallthru
          _
      $region20: #{tpu_custom_call.1} parent=5 // pred_fallthru
        _
      %p115 = scmp.le.s32.totalorder 1, %s11
      %p116 = scmp.lt.s32.totalorder %s11, 3
      %p117 = pnand %p115, %p116
      %p118 = pneg %p117
      // Predicated region
      $region25: #{tpu_custom_call.1} parent=5 // pred_check
        _
      $region26: #{tpu_custom_call.1} parent=5 // pred_check_branch
        %120 = sbr.rel (%p117) target = $region28
      $region27: #{tpu_custom_call.1} parent=5 // pred_region
        %s121 = ssub.s32 %s11, 1
        %s122 = smul.u32 4, %s16
        %p123 = scmp.lt.s32.totalorder %s122, 7
        %s124 = scalar_select %p123, %s122, 7
        %s125 = smul.addr %s124, 8
        %s126 = scalar_lea.vmem %s0, %s125
        %p127 = pneg %p37
        %p128 = pneg %p34
        %p129 = pneg %p58
        %p130 = pneg %p55
        %p131 = pneg %p84
        %p132 = pneg %p81
        %s133 = sand.u32 %s71, 1
        %s134 = scalar_lea.sflag [#allocation3], %s133
        %s135 = sand.u32 %s71, 1
        %s136 = smul.addr %s135, 32
        %s137 = scalar_lea.vmem [#allocation2], %s136
        %s138 = smul.u32 4, %s16
        %p139 = scmp.lt.s32.totalorder %s138, 7
        %s140 = scalar_select %p139, %s138, 7
        %s141 = smul.addr %s140, 8
        %s142 = scalar_lea.vmem %s0, %s141
        %s143 = smul.u32 4, %s16
        %s144 = smul.u32 4, %s16
        %v145 = vld [vmem:[%s142] sm:$0xff]
        %v146 = vld [vmem:[%s142 + $0x8] sm:$0xff]
        %v147 = vld [vmem:[%s142 + $0x10] sm:$0xff]
        %v148 = vld [vmem:[%s142 + $0x18] sm:$0xff]
        %v149 = vld [vmem:[%s1] sm:$0x7]
        %151 = vset.pattern.permute.xlu0 0
        %152 = vperm.xlu0 %151, %v145
        %v153 = vpop.permute.xlu0 %152
        %156 = vset.pattern.permute.xlu0 0
        %157 = vperm.xlu0 %156, %v146
        %v158 = vpop.permute.xlu0 %157
        %161 = vset.pattern.permute.xlu0 0
        %162 = vperm.xlu0 %161, %v147
        %v163 = vpop.permute.xlu0 %162
        %166 = vset.pattern.permute.xlu0 0
        %167 = vperm.xlu0 %166, %v148
        %v168 = vpop.permute.xlu0 %167
        %v170 = vlaneseq
        %v171 = vshrl.u32 %v170, 7
        %v172 = vsub.s32 0, %v171
        %v173 = vrot.slane %v149, %v172
        %v174 = vmul.f32 %v153, %v173
        %v175 = vmul.f32 %v158, %v173
        %v176 = vmul.f32 %v163, %v173
        %v177 = vmul.f32 %v168, %v173
        %178 = vset.pattern.permute.xlu0 1
        %179 = vperm.xlu0 %178, %v145
        %v180 = vpop.permute.xlu0 %179
        %182 = vset.pattern.permute.xlu0 1
        %183 = vperm.xlu0 %182, %v146
        %v184 = vpop.permute.xlu0 %183
        %186 = vset.pattern.permute.xlu0 1
        %187 = vperm.xlu0 %186, %v147
        %v188 = vpop.permute.xlu0 %187
        %190 = vset.pattern.permute.xlu0 1
        %191 = vperm.xlu0 %190, %v148
        %v192 = vpop.permute.xlu0 %191
        %v194 = vlaneseq
        %v195 = vshrl.u32 %v194, 7
        %v196 = vsub.s32 1, %v195
        %v197 = vrot.slane %v149, %v196
        %v198 = vmul.f32 %v180, %v197
        %v199 = vmul.f32 %v184, %v197
        %v200 = vmul.f32 %v188, %v197
        %v201 = vmul.f32 %v192, %v197
        %v202 = vadd.f32 %v174, %v198
        %v203 = vadd.f32 %v175, %v199
        %v204 = vadd.f32 %v176, %v200
        %v205 = vadd.f32 %v177, %v201
        %v206 = vlaneseq
        %v207 = vshrl.u32 %v206, 7
        %v208 = vsub.s32 2, %v207
        %v209 = vrot.slane %v149, %v208
        %v210 = vadd.f32 %v202, %v209
        %v211 = vadd.f32 %v203, %v209
        %v212 = vadd.f32 %v204, %v209
        %v213 = vadd.f32 %v205, %v209
        %v214 = vand.u32 2147483647, %v210
        %vm215 = vcmp.le.f32.partialorder %v214, 0.7853982
        %vm216 = vcmp.lt.s32.totalorder %v210, 0
        %v217 = vand.u32 %v210, 2139095040
        %v218 = vshrl.u32 %v217, 23
        %v219 = vsub.s32 %v218, 127
        %v220 = vand.u32 2147483647, %v210
        %v221 = vand.u32 %v220, 8388607
        %v222 = vor.u32 %v221, 8388608
        %v223 = vsub.s32 0, %v222
        %v224 = vadd.s32 %v219, 1
        %vm225 = vcmp.gt.s32.totalorder %v224, 0
        %v226 = vsel %vm225, %v224, 0
        %v227 = vshrl.u32 %v226, 5
        %v228 = vand.u32 %v226, 31
        %v229 = vsub.s32 32, %v228
        %v230 = vshrl.u32 683565275, %v229
        %v231 = vshll.u32 683565275, %v228
        %v232 = vshrl.u32 2475754826, %v229
        %v233 = vor.u32 %v231, %v232
        %v234 = vshll.u32 2475754826, %v228
        %v235 = vshrl.u32 2131351028, %v229
        %v236 = vor.u32 %v234, %v235
        %v237 = vshll.u32 2131351028, %v228
        %v238 = vshrl.u32 2102212464, %v229
        %v239 = vor.u32 %v237, %v238
        %v240 = vshll.u32 2102212464, %v228
        %v241 = vshrl.u32 920167782, %v229
        %v242 = vor.u32 %v240, %v241
        %v243 = vshll.u32 920167782, %v228
        %v244 = vshrl.u32 1326507024, %v229
        %v245 = vor.u32 %v243, %v244
        %vm246 = vcmp.lt.s32.totalorder %v227, 1
        %vm247 = vcmp.lt.s32.totalorder %v227, 2
        %vm248 = vcmp.lt.s32.totalorder %v227, 3
        %vm249 = vcmp.lt.s32.totalorder %v227, 4
        %v250 = vsel %vm246, %v230, %v233
        %v251 = vsel %vm249, %v239, 2102212464
        %v252 = vsel %vm248, %v236, %v251
        %v253 = vsel %vm247, %v250, %v252
        %v254 = vsel %vm246, %v233, %v236
        %v255 = vsel %vm249, %v242, 920167782
        %v256 = vsel %vm248, %v239, %v255
        %v257 = vsel %vm247, %v254, %v256
        %v258 = vsel %vm246, %v236, %v239
        %v259 = vsel %vm249, %v245, 1326507024
        %v260 = vsel %vm248, %v242, %v259
        %v261 = vsel %vm247, %v258, %v260
        %v262 = vshll.u32 %v222, 8
        %v263 = vmul.u32.u64.compose %v262, %v261
        %v264 = vextract.low.u32 %v263
        %v265 = vextract.high.u32 %v263
        %v266 = vmul.u32.u64.compose %v262, %v257
        %v267 = vextract.low.u32 %v266
        %v268 = vextract.high.u32 %v266
        %v269 = vmul.u32 %v262, %v253
        %v270 = vadd.s32 %v265, %v267
        %vm271 = vc.u32 %v265, %v267
        %v272 = vadd.s32 %v268, 1
        %v273 = vsel %vm271, %v272, %v268
        %v274 = vadd.s32 %v269, %v273
        %v275 = vadd.s32 %v274, 536870912
        %v276 = vshrl.u32 %v275, 30
        %v277 = vshll.u32 %v276, 30
        %v278 = vsub.s32 %v274, %v277
        %vm279 = vcmp.lt.s32.totalorder %v278, 0
        %v280 = vsub.s32 0, %v278
        %v281 = vsel %vm279, %v280, %v278
        %v282 = vclz %v281
        %v283 = vsub.s32 %v282, 2
        %vm284 = vcmp.gt.s32.totalorder 0, %v283
        %v285 = vsel %vm284, 0, %v283
        %v286 = vsub.s32 32, %v285
        %v287 = vshll.u32 %v278, %v285
        %v288 = vshrl.u32 %v270, %v286
        %v289 = vor.u32 %v287, %v288
        %v290 = vsub.s32 4294967266, %v285
        %v291 = vadd.s32 %v290, 127
        %v292 = vshll.u32 %v291, 23
        %v293 = vor.u32 4788187, %v292
        %v294 = vand.u32 2147483647, %v293
        %v296 = vcvt.s32.f32 %v289
        %v297 = vmul.f32 %v296, %v294
        %v298 = vxor.u32 %v297, 2147483648
        %v299 = vsel %vm216, %v298, %v297
        %v300 = vsub.s32 4, %v276
        %v301 = vsel %vm216, %v300, %v276
        %v302 = vsel %vm215, %v210, %v299
        %v303 = vsel %vm215, 0, %v301
        %v304 = vcosq.f32.pop %v302
        %v305 = vsinq.f32.pop %v302
        %vm306 = vweird.f32 %v210
        %v307 = vadd.s32 %v303, 3
        %v308 = vand.u32 %v307, 3
        %vm309 = vcmp.lt.s32.totalorder %v308, 2
        %vm310 = vcmp.eq.s32.totalorder %v308, 0
        %v311 = vxor.u32 %v305, 2147483648
        %v312 = vsel %vm310, %v304, %v311
        %vm313 = vcmp.eq.s32.totalorder %v308, 2
        %v314 = vxor.u32 %v304, 2147483648
        %v315 = vsel %vm313, %v314, %v305
        %v316 = vsel %vm309, %v312, %v315
        %v317 = vsel %vm306, nan, %v316
        %v318 = vand.u32 2147483647, %v211
        %vm319 = vcmp.le.f32.partialorder %v318, 0.7853982
        %vm320 = vcmp.lt.s32.totalorder %v211, 0
        %v321 = vand.u32 %v211, 2139095040
        %v322 = vshrl.u32 %v321, 23
        %v323 = vsub.s32 %v322, 127
        %v324 = vand.u32 2147483647, %v211
        %v325 = vand.u32 %v324, 8388607
        %v326 = vor.u32 %v325, 8388608
        %v327 = vsub.s32 0, %v326
        %v328 = vadd.s32 %v323, 1
        %vm329 = vcmp.gt.s32.totalorder %v328, 0
        %v330 = vsel %vm329, %v328, 0
        %v331 = vshrl.u32 %v330, 5
        %v332 = vand.u32 %v330, 31
        %v333 = vsub.s32 32, %v332
        %v334 = vshrl.u32 683565275, %v333
        %v335 = vshll.u32 683565275, %v332
        %v336 = vshrl.u32 2475754826, %v333
        %v337 = vor.u32 %v335, %v336
        %v338 = vshll.u32 2475754826, %v332
        %v339 = vshrl.u32 2131351028, %v333
        %v340 = vor.u32 %v338, %v339
        %v341 = vshll.u32 2131351028, %v332
        %v342 = vshrl.u32 2102212464, %v333
        %v343 = vor.u32 %v341, %v342
        %v344 = vshll.u32 2102212464, %v332
        %v345 = vshrl.u32 920167782, %v333
        %v346 = vor.u32 %v344, %v345
        %v347 = vshll.u32 920167782, %v332
        %v348 = vshrl.u32 1326507024, %v333
        %v349 = vor.u32 %v347, %v348
        %vm350 = vcmp.lt.s32.totalorder %v331, 1
        %vm351 = vcmp.lt.s32.totalorder %v331, 2
        %vm352 = vcmp.lt.s32.totalorder %v331, 3
        %vm353 = vcmp.lt.s32.totalorder %v331, 4
        %v354 = vsel %vm350, %v334, %v337
        %v355 = vsel %vm353, %v343, 2102212464
        %v356 = vsel %vm352, %v340, %v355
        %v357 = vsel %vm351, %v354, %v356
        %v358 = vsel %vm350, %v337, %v340
        %v359 = vsel %vm353, %v346, 920167782
        %v360 = vsel %vm352, %v343, %v359
        %v361 = vsel %vm351, %v358, %v360
        %v362 = vsel %vm350, %v340, %v343
        %v363 = vsel %vm353, %v349, 1326507024
        %v364 = vsel %vm352, %v346, %v363
        %v365 = vsel %vm351, %v362, %v364
        %v366 = vshll.u32 %v326, 8
        %v367 = vmul.u32.u64.compose %v366, %v365
        %v368 = vextract.low.u32 %v367
        %v369 = vextract.high.u32 %v367
        %v370 = vmul.u32.u64.compose %v366, %v361
        %v371 = vextract.low.u32 %v370
        %v372 = vextract.high.u32 %v370
        %v373 = vmul.u32 %v366, %v357
        %v374 = vadd.s32 %v369, %v371
        %vm375 = vc.u32 %v369, %v371
        %v376 = vadd.s32 %v372, 1
        %v377 = vsel %vm375, %v376, %v372
        %v378 = vadd.s32 %v373, %v377
        %v379 = vadd.s32 %v378, 536870912
        %v380 = vshrl.u32 %v379, 30
        %v381 = vshll.u32 %v380, 30
        %v382 = vsub.s32 %v378, %v381
        %vm383 = vcmp.lt.s32.totalorder %v382, 0
        %v384 = vsub.s32 0, %v382
        %v385 = vsel %vm383, %v384, %v382
        %v386 = vclz %v385
        %v387 = vsub.s32 %v386, 2
        %vm388 = vcmp.gt.s32.totalorder 0, %v387
        %v389 = vsel %vm388, 0, %v387
        %v390 = vsub.s32 32, %v389
        %v391 = vshll.u32 %v382, %v389
        %v392 = vshrl.u32 %v374, %v390
        %v393 = vor.u32 %v391, %v392
        %v394 = vsub.s32 4294967266, %v389
        %v395 = vadd.s32 %v394, 127
        %v396 = vshll.u32 %v395, 23
        %v397 = vor.u32 4788187, %v396
        %v398 = vand.u32 2147483647, %v397
        %v400 = vcvt.s32.f32 %v393
        %v401 = vmul.f32 %v400, %v398
        %v402 = vxor.u32 %v401, 2147483648
        %v403 = vsel %vm320, %v402, %v401
        %v404 = vsub.s32 4, %v380
        %v405 = vsel %vm320, %v404, %v380
        %v406 = vsel %vm319, %v211, %v403
        %v407 = vsel %vm319, 0, %v405
        %v408 = vcosq.f32.pop %v406
        %v409 = vsinq.f32.pop %v406
        %vm410 = vweird.f32 %v211
        %v411 = vadd.s32 %v407, 3
        %v412 = vand.u32 %v411, 3
        %vm413 = vcmp.lt.s32.totalorder %v412, 2
        %vm414 = vcmp.eq.s32.totalorder %v412, 0
        %v415 = vxor.u32 %v409, 2147483648
        %v416 = vsel %vm414, %v408, %v415
        %vm417 = vcmp.eq.s32.totalorder %v412, 2
        %v418 = vxor.u32 %v408, 2147483648
        %v419 = vsel %vm417, %v418, %v409
        %v420 = vsel %vm413, %v416, %v419
        %v421 = vsel %vm410, nan, %v420
        %v422 = vand.u32 2147483647, %v212
        %vm423 = vcmp.le.f32.partialorder %v422, 0.7853982
        %vm424 = vcmp.lt.s32.totalorder %v212, 0
        %v425 = vand.u32 %v212, 2139095040
        %v426 = vshrl.u32 %v425, 23
        %v427 = vsub.s32 %v426, 127
        %v428 = vand.u32 2147483647, %v212
        %v429 = vand.u32 %v428, 8388607
        %v430 = vor.u32 %v429, 8388608
        %v431 = vsub.s32 0, %v430
        %v432 = vadd.s32 %v427, 1
        %vm433 = vcmp.gt.s32.totalorder %v432, 0
        %v434 = vsel %vm433, %v432, 0
        %v435 = vshrl.u32 %v434, 5
        %v436 = vand.u32 %v434, 31
        %v437 = vsub.s32 32, %v436
        %v438 = vshrl.u32 683565275, %v437
        %v439 = vshll.u32 683565275, %v436
        %v440 = vshrl.u32 2475754826, %v437
        %v441 = vor.u32 %v439, %v440
        %v442 = vshll.u32 2475754826, %v436
        %v443 = vshrl.u32 2131351028, %v437
        %v444 = vor.u32 %v442, %v443
        %v445 = vshll.u32 2131351028, %v436
        %v446 = vshrl.u32 2102212464, %v437
        %v447 = vor.u32 %v445, %v446
        %v448 = vshll.u32 2102212464, %v436
        %v449 = vshrl.u32 920167782, %v437
        %v450 = vor.u32 %v448, %v449
        %v451 = vshll.u32 920167782, %v436
        %v452 = vshrl.u32 1326507024, %v437
        %v453 = vor.u32 %v451, %v452
        %vm454 = vcmp.lt.s32.totalorder %v435, 1
        %vm455 = vcmp.lt.s32.totalorder %v435, 2
        %vm456 = vcmp.lt.s32.totalorder %v435, 3
        %vm457 = vcmp.lt.s32.totalorder %v435, 4
        %v458 = vsel %vm454, %v438, %v441
        %v459 = vsel %vm457, %v447, 2102212464
        %v460 = vsel %vm456, %v444, %v459
        %v461 = vsel %vm455, %v458, %v460
        %v462 = vsel %vm454, %v441, %v444
        %v463 = vsel %vm457, %v450, 920167782
        %v464 = vsel %vm456, %v447, %v463
        %v465 = vsel %vm455, %v462, %v464
        %v466 = vsel %vm454, %v444, %v447
        %v467 = vsel %vm457, %v453, 1326507024
        %v468 = vsel %vm456, %v450, %v467
        %v469 = vsel %vm455, %v466, %v468
        %v470 = vshll.u32 %v430, 8
        %v471 = vmul.u32.u64.compose %v470, %v469
        %v472 = vextract.low.u32 %v471
        %v473 = vextract.high.u32 %v471
        %v474 = vmul.u32.u64.compose %v470, %v465
        %v475 = vextract.low.u32 %v474
        %v476 = vextract.high.u32 %v474
        %v477 = vmul.u32 %v470, %v461
        %v478 = vadd.s32 %v473, %v475
        %vm479 = vc.u32 %v473, %v475
        %v480 = vadd.s32 %v476, 1
        %v481 = vsel %vm479, %v480, %v476
        %v482 = vadd.s32 %v477, %v481
        %v483 = vadd.s32 %v482, 536870912
        %v484 = vshrl.u32 %v483, 30
        %v485 = vshll.u32 %v484, 30
        %v486 = vsub.s32 %v482, %v485
        %vm487 = vcmp.lt.s32.totalorder %v486, 0
        %v488 = vsub.s32 0, %v486
        %v489 = vsel %vm487, %v488, %v486
        %v490 = vclz %v489
        %v491 = vsub.s32 %v490, 2
        %vm492 = vcmp.gt.s32.totalorder 0, %v491
        %v493 = vsel %vm492, 0, %v491
        %v494 = vsub.s32 32, %v493
        %v495 = vshll.u32 %v486, %v493
        %v496 = vshrl.u32 %v478, %v494
        %v497 = vor.u32 %v495, %v496
        %v498 = vsub.s32 4294967266, %v493
        %v499 = vadd.s32 %v498, 127
        %v500 = vshll.u32 %v499, 23
        %v501 = vor.u32 4788187, %v500
        %v502 = vand.u32 2147483647, %v501
        %v504 = vcvt.s32.f32 %v497
        %v505 = vmul.f32 %v504, %v502
        %v506 = vxor.u32 %v505, 2147483648
        %v507 = vsel %vm424, %v506, %v505
        %v508 = vsub.s32 4, %v484
        %v509 = vsel %vm424, %v508, %v484
        %v510 = vsel %vm423, %v212, %v507
        %v511 = vsel %vm423, 0, %v509
        %v512 = vcosq.f32.pop %v510
        %v513 = vsinq.f32.pop %v510
        %vm514 = vweird.f32 %v212
        %v515 = vadd.s32 %v511, 3
        %v516 = vand.u32 %v515, 3
        %vm517 = vcmp.lt.s32.totalorder %v516, 2
        %vm518 = vcmp.eq.s32.totalorder %v516, 0
        %v519 = vxor.u32 %v513, 2147483648
        %v520 = vsel %vm518, %v512, %v519
        %vm521 = vcmp.eq.s32.totalorder %v516, 2
        %v522 = vxor.u32 %v512, 2147483648
        %v523 = vsel %vm521, %v522, %v513
        %v524 = vsel %vm517, %v520, %v523
        %v525 = vsel %vm514, nan, %v524
        %v526 = vand.u32 2147483647, %v213
        %vm527 = vcmp.le.f32.partialorder %v526, 0.7853982
        %vm528 = vcmp.lt.s32.totalorder %v213, 0
        %v529 = vand.u32 %v213, 2139095040
        %v530 = vshrl.u32 %v529, 23
        %v531 = vsub.s32 %v530, 127
        %v532 = vand.u32 2147483647, %v213
        %v533 = vand.u32 %v532, 8388607
        %v534 = vor.u32 %v533, 8388608
        %v535 = vsub.s32 0, %v534
        %v536 = vadd.s32 %v531, 1
        %vm537 = vcmp.gt.s32.totalorder %v536, 0
        %v538 = vsel %vm537, %v536, 0
        %v539 = vshrl.u32 %v538, 5
        %v540 = vand.u32 %v538, 31
        %v541 = vsub.s32 32, %v540
        %v542 = vshrl.u32 683565275, %v541
        %v543 = vshll.u32 683565275, %v540
        %v544 = vshrl.u32 2475754826, %v541
        %v545 = vor.u32 %v543, %v544
        %v546 = vshll.u32 2475754826, %v540
        %v547 = vshrl.u32 2131351028, %v541
        %v548 = vor.u32 %v546, %v547
        %v549 = vshll.u32 2131351028, %v540
        %v550 = vshrl.u32 2102212464, %v541
        %v551 = vor.u32 %v549, %v550
        %v552 = vshll.u32 2102212464, %v540
        %v553 = vshrl.u32 920167782, %v541
        %v554 = vor.u32 %v552, %v553
        %v555 = vshll.u32 920167782, %v540
        %v556 = vshrl.u32 1326507024, %v541
        %v557 = vor.u32 %v555, %v556
        %vm558 = vcmp.lt.s32.totalorder %v539, 1
        %vm559 = vcmp.lt.s32.totalorder %v539, 2
        %vm560 = vcmp.lt.s32.totalorder %v539, 3
        %vm561 = vcmp.lt.s32.totalorder %v539, 4
        %v562 = vsel %vm558, %v542, %v545
        %v563 = vsel %vm561, %v551, 2102212464
        %v564 = vsel %vm560, %v548, %v563
        %v565 = vsel %vm559, %v562, %v564
        %v566 = vsel %vm558, %v545, %v548
        %v567 = vsel %vm561, %v554, 920167782
        %v568 = vsel %vm560, %v551, %v567
        %v569 = vsel %vm559, %v566, %v568
        %v570 = vsel %vm558, %v548, %v551
        %v571 = vsel %vm561, %v557, 1326507024
        %v572 = vsel %vm560, %v554, %v571
        %v573 = vsel %vm559, %v570, %v572
        %v574 = vshll.u32 %v534, 8
        %v575 = vmul.u32.u64.compose %v574, %v573
        %v576 = vextract.low.u32 %v575
        %v577 = vextract.high.u32 %v575
        %v578 = vmul.u32.u64.compose %v574, %v569
        %v579 = vextract.low.u32 %v578
        %v580 = vextract.high.u32 %v578
        %v581 = vmul.u32 %v574, %v565
        %v582 = vadd.s32 %v577, %v579
        %vm583 = vc.u32 %v577, %v579
        %v584 = vadd.s32 %v580, 1
        %v585 = vsel %vm583, %v584, %v580
        %v586 = vadd.s32 %v581, %v585
        %v587 = vadd.s32 %v586, 536870912
        %v588 = vshrl.u32 %v587, 30
        %v589 = vshll.u32 %v588, 30
        %v590 = vsub.s32 %v586, %v589
        %vm591 = vcmp.lt.s32.totalorder %v590, 0
        %v592 = vsub.s32 0, %v590
        %v593 = vsel %vm591, %v592, %v590
        %v594 = vclz %v593
        %v595 = vsub.s32 %v594, 2
        %vm596 = vcmp.gt.s32.totalorder 0, %v595
        %v597 = vsel %vm596, 0, %v595
        %v598 = vsub.s32 32, %v597
        %v599 = vshll.u32 %v590, %v597
        %v600 = vshrl.u32 %v582, %v598
        %v601 = vor.u32 %v599, %v600
        %v602 = vsub.s32 4294967266, %v597
        %v603 = vadd.s32 %v602, 127
        %v604 = vshll.u32 %v603, 23
        %v605 = vor.u32 4788187, %v604
        %v606 = vand.u32 2147483647, %v605
        %v608 = vcvt.s32.f32 %v601
        %v609 = vmul.f32 %v608, %v606
        %v610 = vxor.u32 %v609, 2147483648
        %v611 = vsel %vm528, %v610, %v609
        %v612 = vsub.s32 4, %v588
        %v613 = vsel %vm528, %v612, %v588
        %v614 = vsel %vm527, %v213, %v611
        %v615 = vsel %vm527, 0, %v613
        %v616 = vcosq.f32.pop %v614
        %v617 = vsinq.f32.pop %v614
        %vm618 = vweird.f32 %v213
        %v619 = vadd.s32 %v615, 3
        %v620 = vand.u32 %v619, 3
        %vm621 = vcmp.lt.s32.totalorder %v620, 2
        %vm622 = vcmp.eq.s32.totalorder %v620, 0
        %v623 = vxor.u32 %v617, 2147483648
        %v624 = vsel %vm622, %v616, %v623
        %vm625 = vcmp.eq.s32.totalorder %v620, 2
        %v626 = vxor.u32 %v616, 2147483648
        %v627 = vsel %vm625, %v626, %v617
        %v628 = vsel %vm621, %v624, %v627
        %v629 = vsel %vm618, nan, %v628
        %630 = vst [vmem:[%s137] sm:$0xff] %v317
        %631 = vst [vmem:[%s137 + $0x8] sm:$0xff] %v421
        %632 = vst [vmem:[%s137 + $0x10] sm:$0xff] %v525
        %633 = vst [vmem:[%s137 + $0x18] sm:$0xff] %v629
        %s634 = sand.u32 %s71, 1
        %s635 = scalar_lea.sflag [#allocation3], %s634
        %s636 = sand.u32 %s71, 1
        %s637 = smul.addr %s636, 32
        %s638 = scalar_lea.vmem [#allocation2], %s637
        // Predicated region
        $region29: #{tpu_custom_call.1} parent=27 // pred_check
          %p639 = pneg %p81
        $region30: #{tpu_custom_call.1} parent=27 // pred_check_branch
          %641 = sbr.rel (%p639) target = $region32
        $region31: #{tpu_custom_call.1} parent=27 // pred_region
          %s642 = smul.u32 4, %s16
          %s644 = ssub.s32 512, 512
          %645 = vsyncadd %s635, %s644
          %s646 = smul.addr %s642, 128
          %s647 = scalar_lea.hbm %s2, %s646
          %s648 = sshll.u32 %s638, 4
          %s649 = int_to_ptr.vmem [resolvable:$true] %s648
          %654 = dma.vmem_to_hbm [thread:$0]  %s649, 512, %s647, %s635, 128, 128, 8
        $region32: #{tpu_custom_call.1} parent=27 // pred_fallthru
          _
      $region28: #{tpu_custom_call.1} parent=5 // pred_fallthru
        _
      %p655 = scmp.le.s32.totalorder 2, %s11
      // Predicated region
      $region33: #{tpu_custom_call.1} parent=5 // pred_check
        %p656 = pneg %p655
      $region34: #{tpu_custom_call.1} parent=5 // pred_check_branch
        %658 = sbr.rel (%p656) target = $region36
      $region35: #{tpu_custom_call.1} parent=5 // pred_region
        %s659 = ssub.s32 %s11, 2
        // Predicated region
        $region37: #{tpu_custom_call.1} parent=35 // pred_check
          %p660 = pneg %p87
        $region38: #{tpu_custom_call.1} parent=35 // pred_check_branch
          %662 = sbr.rel (%p660) target = $region40
        $region39: #{tpu_custom_call.1} parent=35 // pred_region
          %s663 = sand.u32 %s72, 1
          %s664 = scalar_lea.sflag [#allocation3], %s663
          %s665 = sand.u32 %s72, 1
          %s666 = smul.addr %s665, 32
          %s667 = scalar_lea.vmem [#allocation2], %s666
          %668 = dma.done %s664, 512
        $region40: #{tpu_custom_call.1} parent=35 // pred_fallthru
          _
      $region36: #{tpu_custom_call.1} parent=5 // pred_fallthru
        _
    $region6: #{tpu_custom_call.1} parent=1 // loop_footer
      %s15 = sadd.s32 1, %s11
    $region7: #{tpu_custom_call.1} parent=1 // loop_footer_branch
      %10 = sbr.rel target = $region3
    $region8: #{tpu_custom_call.1} parent=1 // loop_exit
      _
    %669 = vsyncpa [#allocation3], 1
    %s670 = scalar_lea.sflag [#allocation3], 1
    %671 = vsyncpa %s670, 1

</llo_original>
